<compile_context>
chip_gen: v7x
topology: tpu7x:2x2x1
jax: 0.10.0
libtpu: 0.0.40
codegen_flags: <defaults>
</compile_context>

<pallas_src>
import jax
import jax.numpy as jnp
from jax.experimental import pallas as pl
from jax.experimental.pallas import tpu as pltpu


def _h_swish_kernel(x_ref, o_ref):
    x = x_ref[...]
    # h_sigmoid(x) = relu6(x + 3) / 6 ; h_swish(x) = x * h_sigmoid(x)
    hs = jnp.clip(x + 3.0, 0.0, 6.0) * (1.0 / 6.0)
    o_ref[...] = (x * hs).astype(o_ref.dtype)


_MIB = 1024 * 1024
_LANE_CANDIDATES = (4096, 2048, 1024, 512, 256, 128)


def _tpu_generation():
    try:
        kind = jax.devices()[0].device_kind.lower()
    except Exception:
        return None
    if "v7" in kind or "7x" in kind:
        return 7
    if "v6" in kind:
        return 6
    if "v5" in kind:
        return 5
    return None


def _budget():
    """Returns (target_tile_bytes, vmem_limit_bytes, want_core_parallel)."""
    gen = _tpu_generation()
    if gen == 7:
        # 64 MiB physical VMEM per TC; ~4x tile resident -> 24 MiB + headroom.
        return 6 * _MIB, 40 * _MIB, True
    if gen == 6:
        return 6 * _MIB, 48 * _MIB, False
    if gen == 5:
        return 3 * _MIB, 24 * _MIB, False
    return 4 * _MIB, 32 * _MIB, False


def _sublane(itemsize):
    # Packed sublane granularity: (8,128) f32, (16,128) bf16/f16, (32,128) 8-bit.
    if itemsize >= 4:
        return 8
    if itemsize == 2:
        return 16
    return 32


def _choose_lanes(n):
    """Widest lane width (multiple of 128) that exactly divides n, else None."""
    for lanes in _LANE_CANDIDATES:
        if n % lanes == 0:
            return lanes
    return None


def h_swish(x):
    """Elementwise h_swish, same semantics as the PyTorch module's forward."""
    orig_shape = x.shape
    dtype = x.dtype
    n = int(x.size)
    itemsize = jnp.dtype(dtype).itemsize

    tile_bytes, vmem_limit, want_core_parallel = _budget()
    sub = _sublane(itemsize)
    cost = pl.CostEstimate(
        flops=5 * n, transcendentals=0, bytes_accessed=2 * n * itemsize
    )

    flat = x.reshape(-1)
    lanes = _choose_lanes(n)

    if lanes is not None:
        # Common path: lane-dense 2-D slab, wide unmasked stores, big DMAs.
        rows = n // lanes
        operand = flat.reshape(rows, lanes)
        bytes_per_row = lanes * itemsize
        tile_r = max(1, tile_bytes // bytes_per_row)
        if tile_r >= rows:
            tile_r = rows  # full-extent block (exempt from alignment rule)
        else:
            tile_r = max(sub, (tile_r // sub) * sub)
        grid = (pl.cdiv(rows, tile_r),)   # uneven rows: last block is masked
        block = (tile_r, lanes)
        index_map = lambda i: (i, 0)
        out_shape = jax.ShapeDtypeStruct((rows, lanes), dtype)
    else:
        # Ragged path (n not a multiple of 128): pad-free flat 1-D view with an
        # uneven grid; Pallas masks the final partial block on load/store.
        chunk = sub * 128
        block_elems = max(chunk, (tile_bytes // itemsize) // chunk * chunk)
        if block_elems >= n:
            block_elems = n  # whole array in one (full-extent) block
        grid = (pl.cdiv(n, block_elems),)
        block = (block_elems,)
        index_map = lambda i: (i,)
        operand = flat
        out_shape = jax.ShapeDtypeStruct((n,), dtype)

    semantics = ("parallel",)
    if want_core_parallel and grid[0] >= 2:
        core_parallel = getattr(pltpu, "CORE_PARALLEL", None)
        if core_parallel is not None:
            semantics = (core_parallel,)  # shard grid steps across v7x's 2 TCs

    out = pl.pallas_call(
        _h_swish_kernel,
        out_shape=out_shape,
        grid=grid,
        in_specs=[pl.BlockSpec(block, index_map)],
        out_specs=pl.BlockSpec(block, index_map),
        compiler_params=pltpu.CompilerParams(
            dimension_semantics=semantics,
            vmem_limit_bytes=vmem_limit,
        ),
        cost_estimate=cost,
    )(operand)

    return out.reshape(orig_shape)


def _reference_h_swish(x):
    return x * jnp.clip(x + 3.0, 0.0, 6.0) / 6.0


if __name__ == "__main__":
    key = jax.random.PRNGKey(0)
    # NCHW, small shapes consistent with the module: batch=2, channels=4, 16x16
    x = jax.random.normal(key, (2, 4, 16, 16), dtype=jnp.float32) * 4.0

    y = h_swish(x)
    jax.block_until_ready(y)

    y_ref = _reference_h_swish(x)
    assert y.shape == x.shape and y.dtype == x.dtype
    assert jnp.allclose(y, y_ref, atol=1e-6, rtol=1e-6)

    # Ragged size (105 elements, not a multiple of 128): exercises the pad-free
    # 1-D path that replaced the jnp.pad fallback.
    xr = jax.random.normal(jax.random.PRNGKey(1), (3, 5, 7), dtype=jnp.float32) * 4.0
    yr = h_swish(xr)
    jax.block_until_ready(yr)
    assert jnp.allclose(yr, _reference_h_swish(xr), atol=1e-6, rtol=1e-6)

    print("KERNEL_OK")
</pallas_src>

<mosaic_0001>
module attributes {stable_mosaic.version = 11 : i64} {
  func.func @_h_swish_kernel(%arg0: i32, %arg1: memref<1x2048xf32, #tpu.memory_space<vmem>>, %arg2: memref<1x2048xf32, #tpu.memory_space<vmem>>) attributes {dimension_semantics = [#tpu.dimension_semantics<parallel>], iteration_bounds = array<i64: 1>, scalar_prefetch = 0 : i64, scratch_operands = 0 : i64, tpu.core_type = #tpu.core_type<tc>, window_params = [{transform_indices = @transform_0, window_bounds = array<i64: 1, 2048>}, {transform_indices = @transform_1, window_bounds = array<i64: 1, 2048>}]} {
    %c0 = arith.constant 0 : index
    %c0_0 = arith.constant 0 : index
    %0 = vector.load %arg1[%c0, %c0_0] : memref<1x2048xf32, #tpu.memory_space<vmem>>, vector<1x2048xf32>
    %cst = arith.constant 3.000000e+00 : f32
    %1 = vector.broadcast %cst : f32 to vector<1x2048xf32>
    %2 = arith.addf %0, %1 : vector<1x2048xf32>
    %cst_1 = arith.constant 0.000000e+00 : f32
    %cst_2 = arith.constant 6.000000e+00 : f32
    %3 = vector.broadcast %cst_1 : f32 to vector<1x2048xf32>
    %4 = arith.maximumf %3, %2 : vector<1x2048xf32>
    %5 = vector.broadcast %cst_2 : f32 to vector<1x2048xf32>
    %6 = arith.minimumf %5, %4 : vector<1x2048xf32>
    %cst_3 = arith.constant 0.166666672 : f32
    %7 = vector.broadcast %cst_3 : f32 to vector<1x2048xf32>
    %8 = arith.mulf %6, %7 : vector<1x2048xf32>
    %9 = arith.mulf %0, %8 : vector<1x2048xf32>
    %c0_4 = arith.constant 0 : index
    %c0_5 = arith.constant 0 : index
    %10 = vector.load %arg2[%c0_4, %c0_5] : memref<1x2048xf32, #tpu.memory_space<vmem>>, vector<1x2048xf32>
    tpu.vector_store %arg2[%c0_4, %c0_5], %9 {strides = array<i32>} : memref<1x2048xf32, #tpu.memory_space<vmem>>, vector<1x2048xf32>,
    return
  }
  func.func @transform_0(%arg0: i32) -> (i32, i32) {
    %c0_i32 = arith.constant 0 : i32
    %c0_i32_0 = arith.constant 0 : i32
    return %arg0, %c0_i32 : i32, i32
  }
  func.func @transform_1(%arg0: i32) -> (i32, i32) {
    %c0_i32 = arith.constant 0 : i32
    %c0_i32_0 = arith.constant 0 : i32
    return %arg0, %c0_i32 : i32, i32
  }
}

</mosaic_0001>

<llo_original>
// kernel: tpu_custom_call.1
$region0: #{tpu_custom_call.1}
  #allocation0 [shape = 'u32[]', space=smem, size = 0x4, offset = 0x4, fixed_abs, tag = 'smem constant byte address 0x4 - core index']
  #allocation1 [shape = 'u32[144,128]{1,0:T(1,128)}', space=vmem, size = 0x12000, scoped, tag = 'internal scratch']
  %s0 = inlined_call_operand.hbm [shape: f32[1,2048], index: 0, kind: input, shape index: {}]
  %s1 = inlined_call_operand.hbm [shape: f32[1,2048], index: 1, kind: output, shape index: {}]
  %s2 = sld [smem:[#allocation0]]
  $region18: #{tpu_custom_call.1} parent=0
    _
  %s4 = ssub.s32 1, %s2
  %s5 = scalar_select 0, %s4, %s2
  $region1: #{tpu_custom_call.1} parent=0
    #allocation2 [shape = 'u8[8192]{0}', space=vmem, size = 0x2000, scoped, tag = 'input window, operand 0, single buffered']
    #allocation3 [shape = 's32[1]{0}', space=sflag, size = 0x4, scoped, tag = 'scoped memory for tpu_custom_call.1']
    #allocation4 [shape = 's32[1]{0}', space=sflag, size = 0x4, scoped, tag = 'scoped memory for tpu_custom_call.1']
    #allocation5 [shape = 'u8[8192]{0}', space=vmem, size = 0x2000, scoped, tag = 'output window, operand 0, single buffered']
    %6 = vsyncpa [#allocation3], 0
    %7 = vsyncpa [#allocation4], 0
    // Predicated region
    $region2: #{tpu_custom_call.1} parent=1 // pred_check
      _
    $region3: #{tpu_custom_call.1} parent=1 // pred_check_branch
      %9 = sbr.rel (0) target = $region5
    $region4: #{tpu_custom_call.1} parent=1 // pred_region
      %s11 = ssub.s32 256, 256
      %12 = vsyncadd [#allocation3], %s11
      %s14 = sshll.u32 [#allocation2], 4
      %s15 = int_to_ptr.vmem [resolvable:$true] %s14
      %17 = dma.hbm_to_vmem [thread:$0]  %s0, 256, %s15, [#allocation3]
    $region5: #{tpu_custom_call.1} parent=1 // pred_fallthru
      _
    // Predicated region
    $region6: #{tpu_custom_call.1} parent=1 // pred_check
      _
    $region7: #{tpu_custom_call.1} parent=1 // pred_check_branch
      %19 = sbr.rel (0) target = $region9
    $region8: #{tpu_custom_call.1} parent=1 // pred_region
      %20 = dma.done [#allocation3], 256
    $region9: #{tpu_custom_call.1} parent=1 // pred_fallthru
      _
    %v21 = vld [vmem:[#allocation2] sm:$0xff]
    %v22 = vld [vmem:[#allocation2 + $0x8] sm:$0xff]
    %v23 = vadd.f32 %v21, 3.0
    %v24 = vadd.f32 %v22, 3.0
    %v25 = vmax.f32 %v23, 0.0
    %v26 = vmax.f32 %v24, 0.0
    %v27 = vmin.f32 %v25, 6.0
    %v28 = vmin.f32 %v26, 6.0
    %v29 = vmul.f32 %v27, 0.16666667
    %v30 = vmul.f32 %v28, 0.16666667
    %v31 = vmul.f32 %v21, %v29
    %v32 = vmul.f32 %v22, %v30
    %33 = vst [vmem:[#allocation5] sm:$0xff] %v31
    %34 = vst [vmem:[#allocation5 + $0x8] sm:$0xff] %v32
    // Predicated region
    $region10: #{tpu_custom_call.1} parent=1 // pred_check
      _
    $region11: #{tpu_custom_call.1} parent=1 // pred_check_branch
      %36 = sbr.rel (0) target = $region13
    $region12: #{tpu_custom_call.1} parent=1 // pred_region
      %s38 = ssub.s32 256, 256
      %39 = vsyncadd [#allocation4], %s38
      %s41 = sshll.u32 [#allocation5], 4
      %s42 = int_to_ptr.vmem [resolvable:$true] %s41
      %44 = dma.vmem_to_hbm [thread:$0]  %s42, 256, %s1, [#allocation4]
    $region13: #{tpu_custom_call.1} parent=1 // pred_fallthru
      _
    // Predicated region
    $region14: #{tpu_custom_call.1} parent=1 // pred_check
      _
    $region15: #{tpu_custom_call.1} parent=1 // pred_check_branch
      %46 = sbr.rel (0) target = $region17
    $region16: #{tpu_custom_call.1} parent=1 // pred_region
      %47 = dma.done [#allocation4], 256
    $region17: #{tpu_custom_call.1} parent=1 // pred_fallthru
      _
    %48 = vsyncpa [#allocation3], 1
    %49 = vsyncpa [#allocation4], 1

</llo_original>
